<compile_context>
chip_gen: v7x
topology: tpu7x:2x2x1
jax: 0.10.0
libtpu: 0.0.40
codegen_flags: <defaults>
</compile_context>

<pallas_src>
import functools
import math

import jax
import jax.numpy as jnp
from jax.experimental import pallas as pl
from jax.experimental.pallas import tpu as pltpu


def _round_up(v, m):
    return (v + m - 1) // m * m


# --------------------------------------------------------------------------
# Kernel
# --------------------------------------------------------------------------
def _extnalu_kernel(x_ref, w_ref, o_ref, lhs_ref, *, eps, in_features, out_pad):
    x = x_ref[...]                                   # (T, IN) f32

    # Stage the fused LHS [x | log(|x|+eps)] in VMEM scratch (no unaligned
    # lane concatenate needed; these are plain masked stores).
    lhs_ref[:, :in_features] = x
    lhs_ref[:, in_features:] = jnp.log(jnp.abs(x) + eps)

    # Single MXU matmul against the block-diagonal weight:
    #   segments 0..3 <- x @ [G|Gs|Gc|Wa]^T , segment 4 <- log(|x|+eps) @ Wm^T
    fused = jnp.dot(lhs_ref[...], w_ref[...],
                    preferred_element_type=jnp.float32)   # (T, 5*OUT_PAD)

    def fast_sigmoid(z):
        # sigmoid(z) == 0.5*(tanh(z/2)+1): one EUP op instead of exp+recip.
        return 0.5 * (jnp.tanh(0.5 * z) + 1.0)

    g = fast_sigmoid(fused[:, 0 * out_pad:1 * out_pad])
    gs = fast_sigmoid(fused[:, 1 * out_pad:2 * out_pad])
    gc = fast_sigmoid(fused[:, 2 * out_pad:3 * out_pad])
    a = fused[:, 3 * out_pad:4 * out_pad]
    m = jnp.exp(fused[:, 4 * out_pad:5 * out_pad])

    # Fused-form blends (one fewer VALU multiply per blend per element).
    y = m + g * (a - m)
    y = y + gs * (jnp.sin(y) - y)
    y = y + gc * (jnp.cos(y) - y)

    o_ref[...] = y.astype(o_ref.dtype)


# --------------------------------------------------------------------------
# One-time weight preprocessing (hoisted out of the forward path)
# --------------------------------------------------------------------------
def prepare_extnalu_weights(params):
    """Build the fused block-diagonal weight once, at parameter-load time."""
    OUT, IN = params["W_ha"].shape
    OUT_PAD = _round_up(OUT, 128)

    Wa = jnp.tanh(params["W_ha"]) * jax.nn.sigmoid(params["M_ha"])   # (OUT, IN)
    Wm = jnp.tanh(params["W_hm"]) * jax.nn.sigmoid(params["M_hm"])   # (OUT, IN)

    def pad_t(w):  # (OUT, IN) -> (IN, OUT_PAD), transpose + zero-pad output dim
        wt = jnp.asarray(w, jnp.float32).T
        return jnp.pad(wt, ((0, 0), (0, OUT_PAD - OUT)))

    zeros = jnp.zeros((IN, OUT_PAD), jnp.float32)
    top = jnp.concatenate(
        [pad_t(params["G"]), pad_t(params["Gs"]), pad_t(params["Gc"]),
         pad_t(Wa), zeros], axis=1)                                   # (IN, 5*OUT_PAD)
    bot = jnp.concatenate(
        [jnp.zeros((IN, 4 * OUT_PAD), jnp.float32), pad_t(Wm)], axis=1)
    w = jnp.concatenate([top, bot], axis=0)                           # (2*IN, 5*OUT_PAD)

    return {"w": w, "in_features": IN, "out_features": OUT, "out_pad": OUT_PAD}


# --------------------------------------------------------------------------
# Tile selection
# --------------------------------------------------------------------------
def _choose_tile_b(B, max_tile):
    """Balance padded-row EUP waste vs. per-step pipeline overhead (~0.35us);
    prefer >=2 grid steps so both v7x TensorCores get work."""
    B8 = _round_up(max(B, 1), 8)
    step_cost = 32.0  # per-grid-step fixed overhead, in row-equivalents
    best_t, best_cost = 8, None
    for t in (8, 16, 32, 64, 128, 256, 512, 1024):
        if t > max_tile:
            break
        b_pad = _round_up(B8, t)
        steps = b_pad // t
        waste = b_pad - B8          # padded rows still burn the saturated EUP slot
        cost = waste + steps * step_cost
        if steps < 2 and B8 > 8:    # keep both v7x TCs busy when possible
            cost += 2.0 * step_cost
        if best_cost is None or cost < best_cost or (cost == best_cost and t > best_t):
            best_cost, best_t = cost, t
    return best_t


# --------------------------------------------------------------------------
# Forward wrapper
# --------------------------------------------------------------------------
def extnalu_apply(x, prepared, eps=1e-10):
    IN = prepared["in_features"]
    OUT = prepared["out_features"]
    OUT_PAD = prepared["out_pad"]
    w = prepared["w"]

    x = jnp.asarray(x, jnp.float32)
    B = x.shape[0]

    # Per-step VMEM model: double-buffered x + double-buffered out + lhs
    # scratch + fused result + elementwise temps, plus the resident weight.
    per_row_bytes = 4 * (4 * IN + 13 * OUT_PAD)
    weight_bytes = int(w.size) * 4
    budget = 36 * 1024 * 1024                     # v7x-safe working-set target
    max_tile = max(8, min(1024, ((budget - weight_bytes) // per_row_bytes) // 8 * 8))

    TILE_B = _choose_tile_b(B, max_tile)
    B_PAD = _round_up(_round_up(B, 8), TILE_B)

    # Pad batch rows with 1.0 so log(|x|+eps)~0 in padded rows (no inf/NaN).
    x_p = jnp.pad(x, ((0, B_PAD - B), (0, 0)), constant_values=1.0)
    grid = (B_PAD // TILE_B,)

    kernel = functools.partial(_extnalu_kernel, eps=float(eps),
                               in_features=IN, out_pad=OUT_PAD)

    cost = pl.CostEstimate(
        flops=2 * B_PAD * (2 * IN) * (5 * OUT_PAD),
        transcendentals=B_PAD * (IN + 6 * OUT_PAD),
        bytes_accessed=4 * (B_PAD * IN + 2 * IN * 5 * OUT_PAD + B_PAD * OUT_PAD))

    out = pl.pallas_call(
        kernel,
        out_shape=jax.ShapeDtypeStruct((B_PAD, OUT_PAD), jnp.float32),
        grid_spec=pltpu.PrefetchScalarGridSpec(
            num_scalar_prefetch=0,
            grid=grid,
            in_specs=[
                pl.BlockSpec((TILE_B, IN), lambda i: (i, 0)),
                # Weight block never changes across the grid: single-buffer it.
                pl.BlockSpec((2 * IN, 5 * OUT_PAD), lambda i: (0, 0),
                             pipeline_mode=pl.Buffered(1)),
            ],
            out_specs=pl.BlockSpec((TILE_B, OUT_PAD), lambda i: (i, 0)),
            scratch_shapes=[pltpu.VMEM((TILE_B, 2 * IN), jnp.float32)],
        ),
        compiler_params=pltpu.CompilerParams(
            dimension_semantics=("parallel",),
            vmem_limit_bytes=48 * 1024 * 1024),
        cost_estimate=cost,
    )(x_p, w)

    return out[:B, :OUT]


def extnalu_forward(x, params, eps=1e-10):
    """Convenience: prepare weights + apply (prefer caching prepare() output)."""
    return extnalu_apply(x, prepare_extnalu_weights(params), eps=eps)


# --------------------------------------------------------------------------
# Reference & test
# --------------------------------------------------------------------------
def _kaiming_uniform(key, shape, a=math.sqrt(5)):
    # torch.nn.init.kaiming_uniform_ with a=sqrt(5): bound = 1/sqrt(fan_in)
    fan_in = shape[1]
    gain = math.sqrt(2.0 / (1.0 + a * a))
    bound = gain * math.sqrt(3.0 / fan_in)
    return jax.random.uniform(key, shape, jnp.float32, minval=-bound, maxval=bound)


def _reference(x, params, eps=1e-10):
    Wa = jnp.tanh(params["W_ha"]) * jax.nn.sigmoid(params["M_ha"])
    Wm = jnp.tanh(params["W_hm"]) * jax.nn.sigmoid(params["M_hm"])
    g = jax.nn.sigmoid(x @ params["G"].T)
    gs = jax.nn.sigmoid(x @ params["Gs"].T)
    gc = jax.nn.sigmoid(x @ params["Gc"].T)
    a = x @ Wa.T
    m = jnp.exp(jnp.log(jnp.abs(x) + eps) @ Wm.T)
    y = g * a + (1 - g) * m
    y = gs * jnp.sin(y) + (1 - gs) * y
    y = gc * jnp.cos(y) + (1 - gc) * y
    return y


if __name__ == "__main__":
    B, IN, OUT = 8, 32, 64
    key = jax.random.PRNGKey(0)
    kx, *kw = jax.random.split(key, 8)

    names = ("W_ha", "M_ha", "W_hm", "M_hm", "G", "Gs", "Gc")
    params = {n: _kaiming_uniform(k, (OUT, IN)) for n, k in zip(names, kw)}
    x = jax.random.normal(kx, (B, IN), dtype=jnp.float32)

    prepared = prepare_extnalu_weights(params)   # one-time, at parameter-load time
    out = extnalu_apply(x, prepared)
    out = jax.block_until_ready(out)

    ref = _reference(x, params)
    assert out.shape == (B, OUT)
    assert jnp.allclose(out, ref, atol=1e-4, rtol=1e-4), "mismatch vs reference"
    print("KERNEL_OK")
</pallas_src>

<mosaic_0001>
module attributes {stable_mosaic.version = 11 : i64} {
  func.func @_extnalu_kernel(%arg0: i32, %arg1: memref<8x32xf32, #tpu.memory_space<vmem>>, %arg2: memref<64x640xf32, #tpu.memory_space<vmem>>, %arg3: memref<8x128xf32, #tpu.memory_space<vmem>>, %arg4: memref<8x64xf32, #tpu.memory_space<vmem>>) attributes {dimension_semantics = [#tpu.dimension_semantics<parallel>], iteration_bounds = array<i64: 1>, scalar_prefetch = 0 : i64, scratch_operands = 1 : i64, tpu.core_type = #tpu.core_type<tc>, window_params = [{transform_indices = @transform_0, window_bounds = array<i64: 8, 32>}, {pipeline_mode = #tpu.pipeline_mode<synchronous>, transform_indices = @transform_1, window_bounds = array<i64: 64, 640>}, {transform_indices = @transform_2, window_bounds = array<i64: 8, 128>}]} {
    %c0 = arith.constant 0 : index
    %c0_0 = arith.constant 0 : index
    %0 = vector.load %arg1[%c0, %c0_0] : memref<8x32xf32, #tpu.memory_space<vmem>>, vector<8x32xf32>
    %c0_1 = arith.constant 0 : index
    %c0_2 = arith.constant 0 : index
    %1 = vector.load %arg4[%c0_1, %c0_2] : memref<8x64xf32, #tpu.memory_space<vmem>>, vector<8x32xf32>
    tpu.vector_store %arg4[%c0_1, %c0_2], %0 {strides = array<i32>} : memref<8x64xf32, #tpu.memory_space<vmem>>, vector<8x32xf32>,
    %2 = math.absf %0 : vector<8x32xf32>
    %cst = arith.constant 1.000000e-10 : f32
    %3 = vector.broadcast %cst : f32 to vector<8x32xf32>
    %4 = arith.addf %2, %3 : vector<8x32xf32>
    %5 = math.log %4 : vector<8x32xf32>
    %c0_3 = arith.constant 0 : index
    %c32 = arith.constant 32 : index
    %6 = vector.load %arg4[%c0_3, %c32] : memref<8x64xf32, #tpu.memory_space<vmem>>, vector<8x32xf32>
    tpu.vector_store %arg4[%c0_3, %c32], %5 {strides = array<i32>} : memref<8x64xf32, #tpu.memory_space<vmem>>, vector<8x32xf32>,
    %c0_4 = arith.constant 0 : index
    %c0_5 = arith.constant 0 : index
    %7 = vector.load %arg4[%c0_4, %c0_5] : memref<8x64xf32, #tpu.memory_space<vmem>>, vector<8x64xf32>
    %c0_6 = arith.constant 0 : index
    %c0_7 = arith.constant 0 : index
    %8 = vector.load %arg2[%c0_6, %c0_7] : memref<64x640xf32, #tpu.memory_space<vmem>>, vector<64x640xf32>
    %cst_8 = arith.constant dense<0.000000e+00> : vector<8x640xf32>
    %9 = tpu.matmul %7, %8, %cst_8 {dimension_numbers = #tpu.dot_dimension_numbers<[1], [0], [0], [1], [0, 0, 1, 1], [], []>} : vector<8x64xf32>, vector<64x640xf32>, vector<8x640xf32> -> vector<8x640xf32>
    %10 = vector.extract_strided_slice %9 {offsets = [0, 0], sizes = [8, 128], strides = [1, 1]} : vector<8x640xf32> to vector<8x128xf32>
    %cst_9 = arith.constant 5.000000e-01 : f32
    %11 = vector.broadcast %cst_9 : f32 to vector<8x128xf32>
    %12 = arith.mulf %11, %10 : vector<8x128xf32>
    %13 = math.tanh %12 : vector<8x128xf32>
    %cst_10 = arith.constant 1.000000e+00 : f32
    %14 = vector.broadcast %cst_10 : f32 to vector<8x128xf32>
    %15 = arith.addf %13, %14 : vector<8x128xf32>
    %cst_11 = arith.constant 5.000000e-01 : f32
    %16 = vector.broadcast %cst_11 : f32 to vector<8x128xf32>
    %17 = arith.mulf %16, %15 : vector<8x128xf32>
    %18 = vector.extract_strided_slice %9 {offsets = [0, 128], sizes = [8, 128], strides = [1, 1]} : vector<8x640xf32> to vector<8x128xf32>
    %cst_12 = arith.constant 5.000000e-01 : f32
    %19 = vector.broadcast %cst_12 : f32 to vector<8x128xf32>
    %20 = arith.mulf %19, %18 : vector<8x128xf32>
    %21 = math.tanh %20 : vector<8x128xf32>
    %cst_13 = arith.constant 1.000000e+00 : f32
    %22 = vector.broadcast %cst_13 : f32 to vector<8x128xf32>
    %23 = arith.addf %21, %22 : vector<8x128xf32>
    %cst_14 = arith.constant 5.000000e-01 : f32
    %24 = vector.broadcast %cst_14 : f32 to vector<8x128xf32>
    %25 = arith.mulf %24, %23 : vector<8x128xf32>
    %26 = vector.extract_strided_slice %9 {offsets = [0, 256], sizes = [8, 128], strides = [1, 1]} : vector<8x640xf32> to vector<8x128xf32>
    %cst_15 = arith.constant 5.000000e-01 : f32
    %27 = vector.broadcast %cst_15 : f32 to vector<8x128xf32>
    %28 = arith.mulf %27, %26 : vector<8x128xf32>
    %29 = math.tanh %28 : vector<8x128xf32>
    %cst_16 = arith.constant 1.000000e+00 : f32
    %30 = vector.broadcast %cst_16 : f32 to vector<8x128xf32>
    %31 = arith.addf %29, %30 : vector<8x128xf32>
    %cst_17 = arith.constant 5.000000e-01 : f32
    %32 = vector.broadcast %cst_17 : f32 to vector<8x128xf32>
    %33 = arith.mulf %32, %31 : vector<8x128xf32>
    %34 = vector.extract_strided_slice %9 {offsets = [0, 384], sizes = [8, 128], strides = [1, 1]} : vector<8x640xf32> to vector<8x128xf32>
    %35 = vector.extract_strided_slice %9 {offsets = [0, 512], sizes = [8, 128], strides = [1, 1]} : vector<8x640xf32> to vector<8x128xf32>
    %36 = math.exp %35 : vector<8x128xf32>
    %37 = arith.subf %34, %36 : vector<8x128xf32>
    %38 = arith.mulf %17, %37 : vector<8x128xf32>
    %39 = arith.addf %36, %38 : vector<8x128xf32>
    %40 = math.sin %39 : vector<8x128xf32>
    %41 = arith.subf %40, %39 : vector<8x128xf32>
    %42 = arith.mulf %25, %41 : vector<8x128xf32>
    %43 = arith.addf %39, %42 : vector<8x128xf32>
    %44 = math.cos %43 : vector<8x128xf32>
    %45 = arith.subf %44, %43 : vector<8x128xf32>
    %46 = arith.mulf %33, %45 : vector<8x128xf32>
    %47 = arith.addf %43, %46 : vector<8x128xf32>
    %c0_18 = arith.constant 0 : index
    %c0_19 = arith.constant 0 : index
    %48 = vector.load %arg3[%c0_18, %c0_19] : memref<8x128xf32, #tpu.memory_space<vmem>>, vector<8x128xf32>
    tpu.vector_store %arg3[%c0_18, %c0_19], %47 {strides = array<i32>} : memref<8x128xf32, #tpu.memory_space<vmem>>, vector<8x128xf32>,
    return
  }
  func.func @transform_0(%arg0: i32) -> (i32, i32) {
    %c0_i32 = arith.constant 0 : i32
    %c0_i32_0 = arith.constant 0 : i32
    return %arg0, %c0_i32 : i32, i32
  }
  func.func @transform_1(%arg0: i32) -> (i32, i32) {
    %c0_i32 = arith.constant 0 : i32
    %c0_i32_0 = arith.constant 0 : i32
    %c0_i32_1 = arith.constant 0 : i32
    return %c0_i32, %c0_i32_0 : i32, i32
  }
  func.func @transform_2(%arg0: i32) -> (i32, i32) {
    %c0_i32 = arith.constant 0 : i32
    %c0_i32_0 = arith.constant 0 : i32
    return %arg0, %c0_i32 : i32, i32
  }
}

</mosaic_0001>

<llo_original>
// kernel: tpu_custom_call.1
$region0: #{tpu_custom_call.1}
  #allocation0 [shape = 'u32[]', space=smem, size = 0x4, offset = 0x4, fixed_abs, tag = 'smem constant byte address 0x4 - core index']
  #allocation1 [shape = 'u32[144,128]{1,0:T(1,128)}', space=vmem, size = 0x12000, scoped, tag = 'internal scratch']
  #allocation2 [shape = 'f32[8,64]{1,0:T(8,128)}', space=vmem, size = 0x1000, scoped, tag = 'scratch operand']
  %s0 = inlined_call_operand.hbm [shape: f32[8,32], index: 0, kind: input, shape index: {}]
  %s1 = inlined_call_operand.hbm [shape: f32[64,640], index: 1, kind: input, shape index: {}]
  %s2 = inlined_call_operand.hbm [shape: f32[8,128], index: 2, kind: output, shape index: {}]
  %s3 = sld [smem:[#allocation0]]
  $region26: #{tpu_custom_call.1} parent=0
    _
  %s5 = ssub.s32 1, %s3
  %s6 = scalar_select 0, %s5, %s3
  $region1: #{tpu_custom_call.1} parent=0
    #allocation3 [shape = 'u8[4096]{0}', space=vmem, size = 0x1000, scoped, tag = 'input window, operand 0, single buffered']
    #allocation4 [shape = 's32[1]{0}', space=sflag, size = 0x4, scoped, tag = 'scoped memory for tpu_custom_call.1']
    #allocation5 [shape = 's32[1]{0}', space=sflag, size = 0x4, scoped, tag = 'scoped memory for tpu_custom_call.1']
    #allocation6 [shape = 'u8[163840]{0}', space=vmem, size = 0x28000, scoped, tag = 'input window, operand 1, single buffered']
    #allocation7 [shape = 's32[1]{0}', space=sflag, size = 0x4, scoped, tag = 'scoped memory for tpu_custom_call.1']
    #allocation8 [shape = 'u8[4096]{0}', space=vmem, size = 0x1000, scoped, tag = 'output window, operand 0, single buffered']
    %7 = vsyncpa [#allocation4], 0
    %8 = vsyncpa [#allocation7], 0
    %9 = vsyncpa [#allocation5], 0
    // Predicated region
    $region2: #{tpu_custom_call.1} parent=1 // pred_check
      _
    $region3: #{tpu_custom_call.1} parent=1 // pred_check_branch
      %11 = sbr.rel (0) target = $region5
    $region4: #{tpu_custom_call.1} parent=1 // pred_region
      %s13 = ssub.s32 128, 128
      %14 = vsyncadd [#allocation4], %s13
      %s16 = sshll.u32 [#allocation3], 4
      %s17 = int_to_ptr.vmem [resolvable:$true] %s16
      %19 = dma.hbm_to_vmem [thread:$0]  %s0, 128, %s17, [#allocation4]
    $region5: #{tpu_custom_call.1} parent=1 // pred_fallthru
      _
    // Predicated region
    $region6: #{tpu_custom_call.1} parent=1 // pred_check
      _
    $region7: #{tpu_custom_call.1} parent=1 // pred_check_branch
      %21 = sbr.rel (0) target = $region9
    $region8: #{tpu_custom_call.1} parent=1 // pred_region
      %s23 = ssub.s32 5120, 5120
      %24 = vsyncadd [#allocation7], %s23
      %s25 = sshll.u32 [#allocation6], 4
      %s26 = int_to_ptr.vmem [resolvable:$true] %s25
      %31 = dma.hbm_to_vmem [thread:$0]  %s1, 5120, %s26, [#allocation7], 640, 640, 40
    $region9: #{tpu_custom_call.1} parent=1 // pred_fallthru
      _
    // Predicated region
    $region10: #{tpu_custom_call.1} parent=1 // pred_check
      _
    $region11: #{tpu_custom_call.1} parent=1 // pred_check_branch
      %33 = sbr.rel (0) target = $region13
    $region12: #{tpu_custom_call.1} parent=1 // pred_region
      %34 = dma.done [#allocation4], 128
    $region13: #{tpu_custom_call.1} parent=1 // pred_fallthru
      _
    // Predicated region
    $region14: #{tpu_custom_call.1} parent=1 // pred_check
      _
    $region15: #{tpu_custom_call.1} parent=1 // pred_check_branch
      %36 = sbr.rel (0) target = $region17
    $region16: #{tpu_custom_call.1} parent=1 // pred_region
      %37 = dma.done [#allocation7], 5120
    $region17: #{tpu_custom_call.1} parent=1 // pred_fallthru
      _
    %v38 = vld [vmem:[#allocation3] sm:$0xff]
    %vm39 = vcmask 261120
    %40 = vst.msk [vmem:[#allocation2] sm:$0xff] %vm39, %v38
    %v41 = vand.u32 2147483647, %v38
    %v42 = vadd.f32 %v41, 1e-10
    %v43 = vlog2.pop %v42
    %v44 = vmul.f32 %v43, 0.6931472
    %46 = vrot.lane.b32.xlu0 %v44, 32
    %v47 = vpop.permute.xlu0 %46
    %vm49 = vcmask 523520
    %50 = vst.msk [vmem:[#allocation2] sm:$0xff] %vm49, %v47
    %v51 = vld [vmem:[#allocation2] sm:$0xff]
    %v52 = vld [vmem:[#allocation6] sm:$0xff]
    %v53 = vld [vmem:[#allocation6 + $0x8] sm:$0xff]
    %v54 = vld [vmem:[#allocation6 + $0x10] sm:$0xff]
    %v55 = vld [vmem:[#allocation6 + $0x18] sm:$0xff]
    %v56 = vld [vmem:[#allocation6 + $0x20] sm:$0xff]
    %v57 = vld [vmem:[#allocation6 + $0x28] sm:$0xff]
    %v58 = vld [vmem:[#allocation6 + $0x30] sm:$0xff]
    %v59 = vld [vmem:[#allocation6 + $0x38] sm:$0xff]
    %v60 = vld [vmem:[#allocation6 + $0x40] sm:$0xff]
    %v61 = vld [vmem:[#allocation6 + $0x48] sm:$0xff]
    %v62 = vld [vmem:[#allocation6 + $0x50] sm:$0xff]
    %v63 = vld [vmem:[#allocation6 + $0x58] sm:$0xff]
    %v64 = vld [vmem:[#allocation6 + $0x60] sm:$0xff]
    %v65 = vld [vmem:[#allocation6 + $0x68] sm:$0xff]
    %v66 = vld [vmem:[#allocation6 + $0x70] sm:$0xff]
    %v67 = vld [vmem:[#allocation6 + $0x78] sm:$0xff]
    %v68 = vld [vmem:[#allocation6 + $0x80] sm:$0xff]
    %v69 = vld [vmem:[#allocation6 + $0x88] sm:$0xff]
    %v70 = vld [vmem:[#allocation6 + $0x90] sm:$0xff]
    %v71 = vld [vmem:[#allocation6 + $0x98] sm:$0xff]
    %v72 = vld [vmem:[#allocation6 + $0xa0] sm:$0xff]
    %v73 = vld [vmem:[#allocation6 + $0xa8] sm:$0xff]
    %v74 = vld [vmem:[#allocation6 + $0xb0] sm:$0xff]
    %v75 = vld [vmem:[#allocation6 + $0xb8] sm:$0xff]
    %v76 = vld [vmem:[#allocation6 + $0xc0] sm:$0xff]
    %v77 = vld [vmem:[#allocation6 + $0xc8] sm:$0xff]
    %v78 = vld [vmem:[#allocation6 + $0xd0] sm:$0xff]
    %v79 = vld [vmem:[#allocation6 + $0xd8] sm:$0xff]
    %v80 = vld [vmem:[#allocation6 + $0xe0] sm:$0xff]
    %v81 = vld [vmem:[#allocation6 + $0xe8] sm:$0xff]
    %v82 = vld [vmem:[#allocation6 + $0xf0] sm:$0xff]
    %v83 = vld [vmem:[#allocation6 + $0xf8] sm:$0xff]
    %v84 = vld [vmem:[#allocation6 + $0x100] sm:$0xff]
    %v85 = vld [vmem:[#allocation6 + $0x108] sm:$0xff]
    %v86 = vld [vmem:[#allocation6 + $0x110] sm:$0xff]
    %v87 = vld [vmem:[#allocation6 + $0x118] sm:$0xff]
    %v88 = vld [vmem:[#allocation6 + $0x120] sm:$0xff]
    %v89 = vld [vmem:[#allocation6 + $0x128] sm:$0xff]
    %v90 = vld [vmem:[#allocation6 + $0x130] sm:$0xff]
    %v91 = vld [vmem:[#allocation6 + $0x138] sm:$0xff]
    %vm92 = vcmask 523264
    %v94 = vsel %vm92, %v51, 0
    %96 = vmatprep.subr.mxu0 %v53
    %97 = vmatpush1.msra.mxu0 %v52
    %98 = vmatprep.subr.mxu0 %v58
    %99 = vmatpush1.msra.mxu0 %v57
    %100 = vmatprep.subr.mxu0 %v63
    %101 = vmatpush1.msra.mxu0 %v62
    %102 = vmatprep.subr.mxu0 %v68
    %103 = vmatpush1.msra.mxu0 %v67
    %104 = vmatprep.subr.mxu0 %v73
    %105 = vmatpush1.msra.mxu0 %v72
    %106 = vmatprep.subr.mxu0 %v78
    %107 = vmatpush1.msra.mxu0 %v77
    %108 = vmatprep.subr.mxu0 %v83
    %109 = vmatpush1.msra.mxu0 %v82
    %110 = vmatprep.subr.mxu0 %v88
    %111 = vmatpush1.msra.mxu0 %v87
    %112 = vmatprep.subr.mxu0 0.0
    %113 = vmatpush1.msra.mxu0 0.0
    %114 = vmatprep.subr.mxu0 0.0
    %115 = vmatpush1.msra.mxu0 0.0
    %116 = vmatprep.subr.mxu0 0.0
    %117 = vmatpush1.msra.mxu0 0.0
    %118 = vmatprep.subr.mxu0 0.0
    %119 = vmatpush1.msra.mxu0 0.0
    %120 = vmatprep.subr.mxu0 0.0
    %121 = vmatpush1.msra.mxu0 0.0
    %122 = vmatprep.subr.mxu0 0.0
    %123 = vmatpush1.msra.mxu0 0.0
    %124 = vmatprep.subr.mxu0 0.0
    %125 = vmatpush1.msra.mxu0 0.0
    %126 = vmatprep.subr.mxu0 0.0
    %127 = vmatpush1.msra.mxu0 0.0
    %128 = vmatprep.subr.mxu0 0.0
    %129 = vmatpush1.msra.mxu0 0.0
    %130 = vmatprep.subr.mxu0 0.0
    %131 = vmatpush1.msra.mxu0 0.0
    %132 = vmatprep.subr.mxu0 0.0
    %133 = vmatpush1.msra.mxu0 0.0
    %134 = vmatprep.subr.mxu0 0.0
    %135 = vmatpush1.msra.mxu0 0.0
    %136 = vmatprep.subr.mxu0 0.0
    %137 = vmatpush1.msra.mxu0 0.0
    %138 = vmatprep.subr.mxu0 0.0
    %139 = vmatpush1.msra.mxu0 0.0
    %140 = vmatprep.subr.mxu0 0.0
    %141 = vmatpush1.msra.mxu0 0.0
    %142 = vmatprep.subr.mxu0 0.0
    %143 = vmatpush1.msra.mxu0 0.0
    %144 = vmatprep.subr.mxu0 0.0
    %145 = vmatpush1.msra.mxu0 0.0
    %146 = vmatprep.subr.mxu0 0.0
    %147 = vmatpush1.msra.mxu0 0.0
    %148 = vmatprep.subr.mxu0 0.0
    %149 = vmatpush1.msra.mxu0 0.0
    %150 = vmatprep.subr.mxu0 0.0
    %151 = vmatpush1.msra.mxu0 0.0
    %152 = vmatprep.subr.mxu0 0.0
    %153 = vmatpush1.msra.mxu0 0.0
    %154 = vmatprep.subr.mxu0 0.0
    %155 = vmatpush1.msra.mxu0 0.0
    %156 = vmatprep.subr.mxu0 0.0
    %157 = vmatpush1.msra.mxu0 0.0
    %158 = vmatprep.subr.mxu0 0.0
    %159 = vmatpush1.msra.mxu0 0.0
    %160 = vmatprep.mubr.f32.mxu0 0.0
    %161 = vmatmul.mubr.f32.gmra.mrb[0].mxu0 %v94
    %v162 = vpop.f32.mrb[0].mxu0
    %v163 = vadd.f32 0.0, %v162
    %v164 = vpop.f32.mrb[0].mxu0
    %v165 = vadd.f32 0.0, %v164
    %166 = vdwg.mxu0
    %167 = vmatprep.subr.mxu0 %v55
    %168 = vmatpush1.msra.mxu0 %v54
    %169 = vmatprep.subr.mxu0 %v60
    %170 = vmatpush1.msra.mxu0 %v59
    %171 = vmatprep.subr.mxu0 %v65
    %172 = vmatpush1.msra.mxu0 %v64
    %173 = vmatprep.subr.mxu0 %v70
    %174 = vmatpush1.msra.mxu0 %v69
    %175 = vmatprep.subr.mxu0 %v75
    %176 = vmatpush1.msra.mxu0 %v74
    %177 = vmatprep.subr.mxu0 %v80
    %178 = vmatpush1.msra.mxu0 %v79
    %179 = vmatprep.subr.mxu0 %v85
    %180 = vmatpush1.msra.mxu0 %v84
    %181 = vmatprep.subr.mxu0 %v90
    %182 = vmatpush1.msra.mxu0 %v89
    %183 = vmatprep.subr.mxu0 0.0
    %184 = vmatpush1.msra.mxu0 0.0
    %185 = vmatprep.subr.mxu0 0.0
    %186 = vmatpush1.msra.mxu0 0.0
    %187 = vmatprep.subr.mxu0 0.0
    %188 = vmatpush1.msra.mxu0 0.0
    %189 = vmatprep.subr.mxu0 0.0
    %190 = vmatpush1.msra.mxu0 0.0
    %191 = vmatprep.subr.mxu0 0.0
    %192 = vmatpush1.msra.mxu0 0.0
    %193 = vmatprep.subr.mxu0 0.0
    %194 = vmatpush1.msra.mxu0 0.0
    %195 = vmatprep.subr.mxu0 0.0
    %196 = vmatpush1.msra.mxu0 0.0
    %197 = vmatprep.subr.mxu0 0.0
    %198 = vmatpush1.msra.mxu0 0.0
    %199 = vmatprep.subr.mxu0 0.0
    %200 = vmatpush1.msra.mxu0 0.0
    %201 = vmatprep.subr.mxu0 0.0
    %202 = vmatpush1.msra.mxu0 0.0
    %203 = vmatprep.subr.mxu0 0.0
    %204 = vmatpush1.msra.mxu0 0.0
    %205 = vmatprep.subr.mxu0 0.0
    %206 = vmatpush1.msra.mxu0 0.0
    %207 = vmatprep.subr.mxu0 0.0
    %208 = vmatpush1.msra.mxu0 0.0
    %209 = vmatprep.subr.mxu0 0.0
    %210 = vmatpush1.msra.mxu0 0.0
    %211 = vmatprep.subr.mxu0 0.0
    %212 = vmatpush1.msra.mxu0 0.0
    %213 = vmatprep.subr.mxu0 0.0
    %214 = vmatpush1.msra.mxu0 0.0
    %215 = vmatprep.subr.mxu0 0.0
    %216 = vmatpush1.msra.mxu0 0.0
    %217 = vmatprep.subr.mxu0 0.0
    %218 = vmatpush1.msra.mxu0 0.0
    %219 = vmatprep.subr.mxu0 0.0
    %220 = vmatpush1.msra.mxu0 0.0
    %221 = vmatprep.subr.mxu0 0.0
    %222 = vmatpush1.msra.mxu0 0.0
    %223 = vmatprep.subr.mxu0 0.0
    %224 = vmatpush1.msra.mxu0 0.0
    %225 = vmatprep.subr.mxu0 0.0
    %226 = vmatpush1.msra.mxu0 0.0
    %227 = vmatprep.subr.mxu0 0.0
    %228 = vmatpush1.msra.mxu0 0.0
    %229 = vmatprep.subr.mxu0 0.0
    %230 = vmatpush1.msra.mxu0 0.0
    %231 = vmatprep.mubr.f32.mxu0 0.0
    %232 = vmatmul.mubr.f32.gmra.mrb[0].mxu0 %v94
    %v233 = vpop.f32.mrb[0].mxu0
    %v234 = vadd.f32 0.0, %v233
    %v235 = vpop.f32.mrb[0].mxu0
    %v236 = vadd.f32 0.0, %v235
    %237 = vdwg.mxu0
    %238 = vmatprep.subr.mxu0 0.0
    %239 = vmatpush1.msra.mxu0 %v56
    %240 = vmatprep.subr.mxu0 0.0
    %241 = vmatpush1.msra.mxu0 %v61
    %242 = vmatprep.subr.mxu0 0.0
    %243 = vmatpush1.msra.mxu0 %v66
    %244 = vmatprep.subr.mxu0 0.0
    %245 = vmatpush1.msra.mxu0 %v71
    %246 = vmatprep.subr.mxu0 0.0
    %247 = vmatpush1.msra.mxu0 %v76
    %248 = vmatprep.subr.mxu0 0.0
    %249 = vmatpush1.msra.mxu0 %v81
    %250 = vmatprep.subr.mxu0 0.0
    %251 = vmatpush1.msra.mxu0 %v86
    %252 = vmatprep.subr.mxu0 0.0
    %253 = vmatpush1.msra.mxu0 %v91
    %254 = vmatprep.subr.mxu0 0.0
    %255 = vmatpush1.msra.mxu0 0.0
    %256 = vmatprep.subr.mxu0 0.0
    %257 = vmatpush1.msra.mxu0 0.0
    %258 = vmatprep.subr.mxu0 0.0
    %259 = vmatpush1.msra.mxu0 0.0
    %260 = vmatprep.subr.mxu0 0.0
    %261 = vmatpush1.msra.mxu0 0.0
    %262 = vmatprep.subr.mxu0 0.0
    %263 = vmatpush1.msra.mxu0 0.0
    %264 = vmatprep.subr.mxu0 0.0
    %265 = vmatpush1.msra.mxu0 0.0
    %266 = vmatprep.subr.mxu0 0.0
    %267 = vmatpush1.msra.mxu0 0.0
    %268 = vmatprep.subr.mxu0 0.0
    %269 = vmatpush1.msra.mxu0 0.0
    %270 = vmatprep.subr.mxu0 0.0
    %271 = vmatpush1.msra.mxu0 0.0
    %272 = vmatprep.subr.mxu0 0.0
    %273 = vmatpush1.msra.mxu0 0.0
    %274 = vmatprep.subr.mxu0 0.0
    %275 = vmatpush1.msra.mxu0 0.0
    %276 = vmatprep.subr.mxu0 0.0
    %277 = vmatpush1.msra.mxu0 0.0
    %278 = vmatprep.subr.mxu0 0.0
    %279 = vmatpush1.msra.mxu0 0.0
    %280 = vmatprep.subr.mxu0 0.0
    %281 = vmatpush1.msra.mxu0 0.0
    %282 = vmatprep.subr.mxu0 0.0
    %283 = vmatpush1.msra.mxu0 0.0
    %284 = vmatprep.subr.mxu0 0.0
    %285 = vmatpush1.msra.mxu0 0.0
    %286 = vmatprep.subr.mxu0 0.0
    %287 = vmatpush1.msra.mxu0 0.0
    %288 = vmatprep.subr.mxu0 0.0
    %289 = vmatpush1.msra.mxu0 0.0
    %290 = vmatprep.subr.mxu0 0.0
    %291 = vmatpush1.msra.mxu0 0.0
    %292 = vmatprep.subr.mxu0 0.0
    %293 = vmatpush1.msra.mxu0 0.0
    %294 = vmatprep.subr.mxu0 0.0
    %295 = vmatpush1.msra.mxu0 0.0
    %296 = vmatprep.subr.mxu0 0.0
    %297 = vmatpush1.msra.mxu0 0.0
    %298 = vmatprep.subr.mxu0 0.0
    %299 = vmatpush1.msra.mxu0 0.0
    %300 = vmatprep.subr.mxu0 0.0
    %301 = vmatpush1.msra.mxu0 0.0
    %302 = vmatprep.mubr.f32.mxu0 0.0
    %303 = vmatmul.mubr.f32.gmra.mrb[0].mxu0 %v94
    %v304 = vpop.f32.mrb[0].mxu0
    %v305 = vadd.f32 0.0, %v304
    %v306 = vpop.f32.mrb[0].mxu0
    %307 = vdwg.mxu0
    %v308 = vmul.f32 %v163, 0.5
    %v309 = vtanh.pop %v308
    %v310 = vadd.f32 %v309, 1.0
    %v311 = vmul.f32 %v310, 0.5
    %v312 = vmul.f32 %v165, 0.5
    %v313 = vtanh.pop %v312
    %v314 = vadd.f32 %v313, 1.0
    %v315 = vmul.f32 %v314, 0.5
    %v316 = vmul.f32 %v234, 0.5
    %v317 = vtanh.pop %v316
    %v318 = vadd.f32 %v317, 1.0
    %v319 = vmul.f32 %v318, 0.5
    %v320 = vmul.f32 %v305, 1.442695
    %v321 = vpow.pop %v320
    %v322 = vsub.f32 %v236, %v321
    %v323 = vmul.f32 %v311, %v322
    %v324 = vadd.f32 %v321, %v323
    %v325 = vand.u32 2147483647, %v324
    %vm326 = vcmp.le.f32.partialorder %v325, 0.7853982
    %vm327 = vcmp.lt.s32.totalorder %v324, 0
    %v328 = vand.u32 %v324, 2139095040
    %v329 = vshrl.u32 %v328, 23
    %v330 = vsub.s32 %v329, 127
    %v331 = vand.u32 2147483647, %v324
    %v332 = vand.u32 %v331, 8388607
    %v333 = vor.u32 %v332, 8388608
    %v334 = vsub.s32 0, %v333
    %v335 = vadd.s32 %v330, 1
    %vm336 = vcmp.gt.s32.totalorder %v335, 0
    %v337 = vsel %vm336, %v335, 0
    %v338 = vshrl.u32 %v337, 5
    %v339 = vand.u32 %v337, 31
    %v340 = vsub.s32 32, %v339
    %v341 = vshrl.u32 683565275, %v340
    %v342 = vshll.u32 683565275, %v339
    %v343 = vshrl.u32 2475754826, %v340
    %v344 = vor.u32 %v342, %v343
    %v345 = vshll.u32 2475754826, %v339
    %v346 = vshrl.u32 2131351028, %v340
    %v347 = vor.u32 %v345, %v346
    %v348 = vshll.u32 2131351028, %v339
    %v349 = vshrl.u32 2102212464, %v340
    %v350 = vor.u32 %v348, %v349
    %v351 = vshll.u32 2102212464, %v339
    %v352 = vshrl.u32 920167782, %v340
    %v353 = vor.u32 %v351, %v352
    %v354 = vshll.u32 920167782, %v339
    %v355 = vshrl.u32 1326507024, %v340
    %v356 = vor.u32 %v354, %v355
    %vm357 = vcmp.lt.s32.totalorder %v338, 1
    %vm358 = vcmp.lt.s32.totalorder %v338, 2
    %vm359 = vcmp.lt.s32.totalorder %v338, 3
    %vm360 = vcmp.lt.s32.totalorder %v338, 4
    %v361 = vsel %vm357, %v341, %v344
    %v362 = vsel %vm360, %v350, 2102212464
    %v363 = vsel %vm359, %v347, %v362
    %v364 = vsel %vm358, %v361, %v363
    %v365 = vsel %vm357, %v344, %v347
    %v366 = vsel %vm360, %v353, 920167782
    %v367 = vsel %vm359, %v350, %v366
    %v368 = vsel %vm358, %v365, %v367
    %v369 = vsel %vm357, %v347, %v350
    %v370 = vsel %vm360, %v356, 1326507024
    %v371 = vsel %vm359, %v353, %v370
    %v372 = vsel %vm358, %v369, %v371
    %v373 = vshll.u32 %v333, 8
    %v374 = vmul.u32.u64.compose %v373, %v372
    %v375 = vextract.low.u32 %v374
    %v376 = vextract.high.u32 %v374
    %v377 = vmul.u32.u64.compose %v373, %v368
    %v378 = vextract.low.u32 %v377
    %v379 = vextract.high.u32 %v377
    %v380 = vmul.u32 %v373, %v364
    %v381 = vadd.s32 %v376, %v378
    %vm382 = vc.u32 %v376, %v378
    %v383 = vadd.s32 %v379, 1
    %v384 = vsel %vm382, %v383, %v379
    %v385 = vadd.s32 %v380, %v384
    %v386 = vadd.s32 %v385, 536870912
    %v387 = vshrl.u32 %v386, 30
    %v388 = vshll.u32 %v387, 30
    %v389 = vsub.s32 %v385, %v388
    %vm390 = vcmp.lt.s32.totalorder %v389, 0
    %v391 = vsub.s32 0, %v389
    %v392 = vsel %vm390, %v391, %v389
    %v393 = vclz %v392
    %v394 = vsub.s32 %v393, 2
    %vm395 = vcmp.gt.s32.totalorder 0, %v394
    %v396 = vsel %vm395, 0, %v394
    %v397 = vsub.s32 32, %v396
    %v398 = vshll.u32 %v389, %v396
    %v399 = vshrl.u32 %v381, %v397
    %v400 = vor.u32 %v398, %v399
    %v401 = vsub.s32 4294967266, %v396
    %v402 = vadd.s32 %v401, 127
    %v403 = vshll.u32 %v402, 23
    %v404 = vor.u32 4788187, %v403
    %v405 = vand.u32 2147483647, %v404
    %v407 = vcvt.s32.f32 %v400
    %v408 = vmul.f32 %v407, %v405
    %v409 = vxor.u32 %v408, 2147483648
    %v410 = vsel %vm327, %v409, %v408
    %v411 = vsub.s32 4, %v387
    %v412 = vsel %vm327, %v411, %v387
    %v413 = vsel %vm326, %v324, %v410
    %v414 = vsel %vm326, 0, %v412
    %v415 = vcosq.f32.pop %v413
    %v416 = vsinq.f32.pop %v413
    %vm417 = vweird.f32 %v324
    %v418 = vadd.s32 %v414, 3
    %v419 = vand.u32 %v418, 3
    %vm420 = vcmp.lt.s32.totalorder %v419, 2
    %vm421 = vcmp.eq.s32.totalorder %v419, 0
    %v422 = vxor.u32 %v416, 2147483648
    %v423 = vsel %vm421, %v415, %v422
    %vm424 = vcmp.eq.s32.totalorder %v419, 2
    %v425 = vxor.u32 %v415, 2147483648
    %v426 = vsel %vm424, %v425, %v416
    %v427 = vsel %vm420, %v423, %v426
    %v428 = vsel %vm417, nan, %v427
    %v429 = vsub.f32 %v428, %v324
    %v430 = vmul.f32 %v315, %v429
    %v431 = vadd.f32 %v324, %v430
    %v432 = vand.u32 2147483647, %v431
    %vm433 = vcmp.le.f32.partialorder %v432, 0.7853982
    %vm434 = vcmp.lt.s32.totalorder %v431, 0
    %v435 = vand.u32 %v431, 2139095040
    %v436 = vshrl.u32 %v435, 23
    %v437 = vsub.s32 %v436, 127
    %v438 = vand.u32 2147483647, %v431
    %v439 = vand.u32 %v438, 8388607
    %v440 = vor.u32 %v439, 8388608
    %v441 = vsub.s32 0, %v440
    %v442 = vadd.s32 %v437, 1
    %vm443 = vcmp.gt.s32.totalorder %v442, 0
    %v444 = vsel %vm443, %v442, 0
    %v445 = vshrl.u32 %v444, 5
    %v446 = vand.u32 %v444, 31
    %v447 = vsub.s32 32, %v446
    %v448 = vshrl.u32 683565275, %v447
    %v449 = vshll.u32 683565275, %v446
    %v450 = vshrl.u32 2475754826, %v447
    %v451 = vor.u32 %v449, %v450
    %v452 = vshll.u32 2475754826, %v446
    %v453 = vshrl.u32 2131351028, %v447
    %v454 = vor.u32 %v452, %v453
    %v455 = vshll.u32 2131351028, %v446
    %v456 = vshrl.u32 2102212464, %v447
    %v457 = vor.u32 %v455, %v456
    %v458 = vshll.u32 2102212464, %v446
    %v459 = vshrl.u32 920167782, %v447
    %v460 = vor.u32 %v458, %v459
    %v461 = vshll.u32 920167782, %v446
    %v462 = vshrl.u32 1326507024, %v447
    %v463 = vor.u32 %v461, %v462
    %vm464 = vcmp.lt.s32.totalorder %v445, 1
    %vm465 = vcmp.lt.s32.totalorder %v445, 2
    %vm466 = vcmp.lt.s32.totalorder %v445, 3
    %vm467 = vcmp.lt.s32.totalorder %v445, 4
    %v468 = vsel %vm464, %v448, %v451
    %v469 = vsel %vm467, %v457, 2102212464
    %v470 = vsel %vm466, %v454, %v469
    %v471 = vsel %vm465, %v468, %v470
    %v472 = vsel %vm464, %v451, %v454
    %v473 = vsel %vm467, %v460, 920167782
    %v474 = vsel %vm466, %v457, %v473
    %v475 = vsel %vm465, %v472, %v474
    %v476 = vsel %vm464, %v454, %v457
    %v477 = vsel %vm467, %v463, 1326507024
    %v478 = vsel %vm466, %v460, %v477
    %v479 = vsel %vm465, %v476, %v478
    %v480 = vshll.u32 %v440, 8
    %v481 = vmul.u32.u64.compose %v480, %v479
    %v482 = vextract.low.u32 %v481
    %v483 = vextract.high.u32 %v481
    %v484 = vmul.u32.u64.compose %v480, %v475
    %v485 = vextract.low.u32 %v484
    %v486 = vextract.high.u32 %v484
    %v487 = vmul.u32 %v480, %v471
    %v488 = vadd.s32 %v483, %v485
    %vm489 = vc.u32 %v483, %v485
    %v490 = vadd.s32 %v486, 1
    %v491 = vsel %vm489, %v490, %v486
    %v492 = vadd.s32 %v487, %v491
    %v493 = vadd.s32 %v492, 536870912
    %v494 = vshrl.u32 %v493, 30
    %v495 = vshll.u32 %v494, 30
    %v496 = vsub.s32 %v492, %v495
    %vm497 = vcmp.lt.s32.totalorder %v496, 0
    %v498 = vsub.s32 0, %v496
    %v499 = vsel %vm497, %v498, %v496
    %v500 = vclz %v499
    %v501 = vsub.s32 %v500, 2
    %vm502 = vcmp.gt.s32.totalorder 0, %v501
    %v503 = vsel %vm502, 0, %v501
    %v504 = vsub.s32 32, %v503
    %v505 = vshll.u32 %v496, %v503
    %v506 = vshrl.u32 %v488, %v504
    %v507 = vor.u32 %v505, %v506
    %v508 = vsub.s32 4294967266, %v503
    %v509 = vadd.s32 %v508, 127
    %v510 = vshll.u32 %v509, 23
    %v511 = vor.u32 4788187, %v510
    %v512 = vand.u32 2147483647, %v511
    %v514 = vcvt.s32.f32 %v507
    %v515 = vmul.f32 %v514, %v512
    %v516 = vxor.u32 %v515, 2147483648
    %v517 = vsel %vm434, %v516, %v515
    %v518 = vsub.s32 4, %v494
    %v519 = vsel %vm434, %v518, %v494
    %v520 = vsel %vm433, %v431, %v517
    %v521 = vsel %vm433, 0, %v519
    %v522 = vcosq.f32.pop %v520
    %v523 = vsinq.f32.pop %v520
    %vm524 = vweird.f32 %v431
    %v525 = vand.u32 %v521, 3
    %vm526 = vcmp.lt.s32.totalorder %v525, 2
    %vm527 = vcmp.eq.s32.totalorder %v525, 0
    %v528 = vxor.u32 %v523, 2147483648
    %v529 = vsel %vm527, %v522, %v528
    %vm530 = vcmp.eq.s32.totalorder %v525, 2
    %v531 = vxor.u32 %v522, 2147483648
    %v532 = vsel %vm530, %v531, %v523
    %v533 = vsel %vm526, %v529, %v532
    %v534 = vsel %vm524, nan, %v533
    %v535 = vsub.f32 %v534, %v431
    %v536 = vmul.f32 %v319, %v535
    %v537 = vadd.f32 %v431, %v536
    %538 = vst [vmem:[#allocation8] sm:$0xff] %v537
    // Predicated region
    $region18: #{tpu_custom_call.1} parent=1 // pred_check
      _
    $region19: #{tpu_custom_call.1} parent=1 // pred_check_branch
      %540 = sbr.rel (0) target = $region21
    $region20: #{tpu_custom_call.1} parent=1 // pred_region
      %s542 = ssub.s32 128, 128
      %543 = vsyncadd [#allocation5], %s542
      %s545 = sshll.u32 [#allocation8], 4
      %s546 = int_to_ptr.vmem [resolvable:$true] %s545
      %548 = dma.vmem_to_hbm [thread:$0]  %s546, 128, %s2, [#allocation5]
    $region21: #{tpu_custom_call.1} parent=1 // pred_fallthru
      _
    // Predicated region
    $region22: #{tpu_custom_call.1} parent=1 // pred_check
      _
    $region23: #{tpu_custom_call.1} parent=1 // pred_check_branch
      %550 = sbr.rel (0) target = $region25
    $region24: #{tpu_custom_call.1} parent=1 // pred_region
      %551 = dma.done [#allocation5], 128
    $region25: #{tpu_custom_call.1} parent=1 // pred_fallthru
      _
    %552 = vsyncpa [#allocation4], 1
    %553 = vsyncpa [#allocation7], 1
    %554 = vsyncpa [#allocation5], 1

</llo_original>
